<compile_context>
chip_gen: v5e
topology: v5e:2x2
jax: 0.10.0
libtpu: 0.0.40
codegen_flags: <defaults>
</compile_context>

<pallas_src>
import jax
import jax.numpy as jnp
from jax.experimental import pallas as pl
from jax.experimental.pallas import tpu as pltpu


def cls_decoder_kernel(atten_ref, conv_ref, w_ref, b_ref, out_ref):
    # atten_ref: (TN, K, L)   conv_ref: (TN, L, C)
    # w_ref:     (C, NP)      b_ref:    (1, NP)     out_ref: (TN, K, NP)
    a = atten_ref[...]                       # (TN, K, L)
    cv = conv_ref[...]                       # (TN, L, C)

    # Attention pooling: batched (K,L)@(L,C) on the MXU, f32 accumulation.
    ac = jnp.einsum(
        "nkl,nlc->nkc", a, cv, preferred_element_type=jnp.float32
    )                                        # (TN, K, C)

    # fc: C is tiny, so do C unrolled broadcast FMAs on the VPU (f32 — safe on
    # v5e which has no bf16 VALU) instead of a second, serially-dependent MXU op.
    w = w_ref[...].astype(jnp.float32)       # (C, NP)
    acc = jnp.zeros(out_ref.shape, jnp.float32) + b_ref[...].astype(jnp.float32)
    for c in range(w.shape[0]):              # static unroll over C
        acc = acc + ac[:, :, c : c + 1] * w[c, :]

    out_ref[...] = acc.astype(out_ref.dtype)


def cls_decoder(atten, conv_out, w_fc, b_fc, *, block_n=None):
    """atten: (N, K, H, W); conv_out: (N, C, H, W);
    w_fc: (nclass, C) (PyTorch Linear layout); b_fc: (nclass,)"""
    N, K = atten.shape[0], atten.shape[1]
    C = conv_out.shape[1]
    L = conv_out.shape[2] * conv_out.shape[3]
    nclass = w_fc.shape[0]

    LANE = 128
    NP = pl.cdiv(nclass, LANE) * LANE        # lane-dense padded class dim

    # Flatten spatial dims; pre-permute conv_out to (N, L, C) so the in-kernel
    # dot needs no transpose (XLA fuses the permute into the producer).
    atten_f = atten.reshape(N, K, L)
    conv_f = jnp.transpose(conv_out.reshape(N, C, L), (0, 2, 1))   # (N, L, C)

    # Pad fc params to lane-dense NP.
    w_t = jnp.zeros((C, NP), w_fc.dtype).at[:, :nclass].set(w_fc.T)
    b_2d = jnp.zeros((1, NP), b_fc.dtype).at[:, :nclass].set(b_fc)

    # Block several batch elements per grid step to amortize per-step overhead,
    # keeping (when N allows it) >=2 grid steps so v7x megacore splits them.
    if block_n is None:
        block_n = 1 if N <= 2 else min(8, max(1, N // 2))
    n_pad = pl.cdiv(N, block_n) * block_n
    if n_pad != N:
        pad = n_pad - N
        atten_f = jnp.pad(atten_f, ((0, pad), (0, 0), (0, 0)))
        conv_f = jnp.pad(conv_f, ((0, pad), (0, 0), (0, 0)))
    grid = (n_pad // block_n,)

    # NOTE: w_t / b_2d are grid-invariant; at this size their default
    # double-buffering costs ~4 KiB. Pin with pipeline_mode=pl.Buffered(1)
    # only if C*NP grows large.
    out = pl.pallas_call(
        cls_decoder_kernel,
        out_shape=jax.ShapeDtypeStruct((n_pad, K, NP), atten.dtype),
        grid_spec=pltpu.PrefetchScalarGridSpec(
            num_scalar_prefetch=0,
            grid=grid,
            in_specs=[
                pl.BlockSpec((block_n, K, L), lambda n: (n, 0, 0)),
                pl.BlockSpec((block_n, L, C), lambda n: (n, 0, 0)),
                pl.BlockSpec((C, NP), lambda n: (0, 0)),
                pl.BlockSpec((1, NP), lambda n: (0, 0)),
            ],
            out_specs=pl.BlockSpec((block_n, K, NP), lambda n: (n, 0, 0)),
        ),
        compiler_params=pltpu.CompilerParams(
            dimension_semantics=("parallel",),
            vmem_limit_bytes=32 * 1024 * 1024,
        ),
    )(atten_f, conv_f, w_t, b_2d)

    return out[:N, :, :nclass]


def cls_decoder_ref(atten, conv_out, w_fc, b_fc):
    N, K = atten.shape[0], atten.shape[1]
    C = conv_out.shape[1]
    a = atten.reshape(N, K, -1)
    c = conv_out.reshape(N, C, -1).transpose(0, 2, 1)
    ao = jnp.einsum("nkl,nlc->nkc", a, c)
    return ao @ w_fc.T + b_fc


if __name__ == "__main__":
    # Small shapes consistent with the module: K=8 attention maps, C=4 channels,
    # 16x16 spatial, nclass=10.
    N, K, C, H, W, nclass = 2, 8, 4, 16, 16, 10

    key = jax.random.PRNGKey(0)
    k1, k2, k3, k4 = jax.random.split(key, 4)
    atten = jax.random.normal(k1, (N, K, H, W), dtype=jnp.float32)
    conv_out = jax.random.normal(k2, (N, C, H, W), dtype=jnp.float32)
    # LazyLinear materializes as Linear(C, nclass): explicit params here.
    w_fc = jax.random.normal(k3, (nclass, C), dtype=jnp.float32) * 0.1
    b_fc = jax.random.normal(k4, (nclass,), dtype=jnp.float32) * 0.1

    out = cls_decoder(atten, conv_out, w_fc, b_fc)
    out = jax.block_until_ready(out)

    ref = cls_decoder_ref(atten, conv_out, w_fc, b_fc)
    assert out.shape == (N, K, nclass)
    assert jnp.allclose(out, ref, atol=1e-4, rtol=1e-4), "mismatch vs reference"

    print("KERNEL_OK")
</pallas_src>

<mosaic_0001>
module attributes {stable_mosaic.version = 11 : i64} {
  func.func @cls_decoder_kernel(%arg0: i32, %arg1: memref<1x8x256xf32, #tpu.memory_space<vmem>>, %arg2: memref<1x256x4xf32, #tpu.memory_space<vmem>>, %arg3: memref<4x128xf32, #tpu.memory_space<vmem>>, %arg4: memref<1x128xf32, #tpu.memory_space<vmem>>, %arg5: memref<1x8x128xf32, #tpu.memory_space<vmem>>) attributes {dimension_semantics = [#tpu.dimension_semantics<parallel>], iteration_bounds = array<i64: 2>, scalar_prefetch = 0 : i64, scratch_operands = 0 : i64, tpu.core_type = #tpu.core_type<tc>, window_params = [{transform_indices = @transform_0, window_bounds = array<i64: 1, 8, 256>}, {transform_indices = @transform_1, window_bounds = array<i64: 1, 256, 4>}, {pipeline_mode = #tpu.pipeline_mode<synchronous>, transform_indices = @transform_2, window_bounds = array<i64: 4, 128>}, {pipeline_mode = #tpu.pipeline_mode<synchronous>, transform_indices = @transform_3, window_bounds = array<i64: 1, 128>}, {transform_indices = @transform_4, window_bounds = array<i64: 1, 8, 128>}]} {
    %c0 = arith.constant 0 : index
    %c0_0 = arith.constant 0 : index
    %c0_1 = arith.constant 0 : index
    %0 = vector.load %arg1[%c0, %c0_0, %c0_1] : memref<1x8x256xf32, #tpu.memory_space<vmem>>, vector<1x8x256xf32>
    %c0_2 = arith.constant 0 : index
    %c0_3 = arith.constant 0 : index
    %c0_4 = arith.constant 0 : index
    %1 = vector.load %arg2[%c0_2, %c0_3, %c0_4] : memref<1x256x4xf32, #tpu.memory_space<vmem>>, vector<1x256x4xf32>
    "tpu.trace_start"() <{level = 10 : i32, message = "nkl,nlc->nkc"}> : () -> ()
    %cst = arith.constant dense<0.000000e+00> : vector<1x8x4xf32>
    %2 = tpu.matmul %0, %1, %cst {dimension_numbers = #tpu.dot_dimension_numbers<[2], [1], [1], [2], [0, 0, 0, 1, 1, 2], [0], [0]>} : vector<1x8x256xf32>, vector<1x256x4xf32>, vector<1x8x4xf32> -> vector<1x8x4xf32>
    "tpu.trace_stop"() : () -> ()
    %c0_5 = arith.constant 0 : index
    %c0_6 = arith.constant 0 : index
    %3 = vector.load %arg3[%c0_5, %c0_6] : memref<4x128xf32, #tpu.memory_space<vmem>>, vector<4x128xf32>
    %cst_7 = arith.constant 0.000000e+00 : f32
    %4 = vector.broadcast %cst_7 : f32 to vector<1x8x128xf32>
    %c0_8 = arith.constant 0 : index
    %c0_9 = arith.constant 0 : index
    %5 = vector.load %arg4[%c0_8, %c0_9] : memref<1x128xf32, #tpu.memory_space<vmem>>, vector<1x128xf32>
    %6 = vector.shape_cast %5 : vector<1x128xf32> to vector<1x1x128xf32>
    %7 = vector.broadcast %6 : vector<1x1x128xf32> to vector<1x8x128xf32>
    %8 = arith.addf %4, %7 : vector<1x8x128xf32>
    %9 = vector.extract_strided_slice %2 {offsets = [0, 0, 0], sizes = [1, 8, 1], strides = [1, 1, 1]} : vector<1x8x4xf32> to vector<1x8x1xf32>
    %10 = vector.extract_strided_slice %3 {offsets = [0, 0], sizes = [1, 128], strides = [1, 1]} : vector<4x128xf32> to vector<1x128xf32>
    %11 = vector.shape_cast %10 : vector<1x128xf32> to vector<128xf32>
    %12 = vector.shape_cast %11 : vector<128xf32> to vector<1x1x128xf32>
    %13 = vector.broadcast %9 : vector<1x8x1xf32> to vector<1x8x128xf32>
    %14 = vector.broadcast %12 : vector<1x1x128xf32> to vector<1x8x128xf32>
    %15 = arith.mulf %13, %14 : vector<1x8x128xf32>
    %16 = arith.addf %8, %15 : vector<1x8x128xf32>
    %17 = vector.extract_strided_slice %2 {offsets = [0, 0, 1], sizes = [1, 8, 1], strides = [1, 1, 1]} : vector<1x8x4xf32> to vector<1x8x1xf32>
    %18 = vector.extract_strided_slice %3 {offsets = [1, 0], sizes = [1, 128], strides = [1, 1]} : vector<4x128xf32> to vector<1x128xf32>
    %19 = vector.shape_cast %18 : vector<1x128xf32> to vector<128xf32>
    %20 = vector.shape_cast %19 : vector<128xf32> to vector<1x1x128xf32>
    %21 = vector.broadcast %17 : vector<1x8x1xf32> to vector<1x8x128xf32>
    %22 = vector.broadcast %20 : vector<1x1x128xf32> to vector<1x8x128xf32>
    %23 = arith.mulf %21, %22 : vector<1x8x128xf32>
    %24 = arith.addf %16, %23 : vector<1x8x128xf32>
    %25 = vector.extract_strided_slice %2 {offsets = [0, 0, 2], sizes = [1, 8, 1], strides = [1, 1, 1]} : vector<1x8x4xf32> to vector<1x8x1xf32>
    %26 = vector.extract_strided_slice %3 {offsets = [2, 0], sizes = [1, 128], strides = [1, 1]} : vector<4x128xf32> to vector<1x128xf32>
    %27 = vector.shape_cast %26 : vector<1x128xf32> to vector<128xf32>
    %28 = vector.shape_cast %27 : vector<128xf32> to vector<1x1x128xf32>
    %29 = vector.broadcast %25 : vector<1x8x1xf32> to vector<1x8x128xf32>
    %30 = vector.broadcast %28 : vector<1x1x128xf32> to vector<1x8x128xf32>
    %31 = arith.mulf %29, %30 : vector<1x8x128xf32>
    %32 = arith.addf %24, %31 : vector<1x8x128xf32>
    %33 = vector.extract_strided_slice %2 {offsets = [0, 0, 3], sizes = [1, 8, 1], strides = [1, 1, 1]} : vector<1x8x4xf32> to vector<1x8x1xf32>
    %34 = vector.extract_strided_slice %3 {offsets = [3, 0], sizes = [1, 128], strides = [1, 1]} : vector<4x128xf32> to vector<1x128xf32>
    %35 = vector.shape_cast %34 : vector<1x128xf32> to vector<128xf32>
    %36 = vector.shape_cast %35 : vector<128xf32> to vector<1x1x128xf32>
    %37 = vector.broadcast %33 : vector<1x8x1xf32> to vector<1x8x128xf32>
    %38 = vector.broadcast %36 : vector<1x1x128xf32> to vector<1x8x128xf32>
    %39 = arith.mulf %37, %38 : vector<1x8x128xf32>
    %40 = arith.addf %32, %39 : vector<1x8x128xf32>
    %c0_10 = arith.constant 0 : index
    %c0_11 = arith.constant 0 : index
    %c0_12 = arith.constant 0 : index
    %41 = vector.load %arg5[%c0_10, %c0_11, %c0_12] : memref<1x8x128xf32, #tpu.memory_space<vmem>>, vector<1x8x128xf32>
    tpu.vector_store %arg5[%c0_10, %c0_11, %c0_12], %40 {strides = array<i32>} : memref<1x8x128xf32, #tpu.memory_space<vmem>>, vector<1x8x128xf32>,
    return
  }
  func.func @transform_0(%arg0: i32) -> (i32, i32, i32) {
    %c0_i32 = arith.constant 0 : i32
    %c0_i32_0 = arith.constant 0 : i32
    %c0_i32_1 = arith.constant 0 : i32
    return %arg0, %c0_i32, %c0_i32_0 : i32, i32, i32
  }
  func.func @transform_1(%arg0: i32) -> (i32, i32, i32) {
    %c0_i32 = arith.constant 0 : i32
    %c0_i32_0 = arith.constant 0 : i32
    %c0_i32_1 = arith.constant 0 : i32
    return %arg0, %c0_i32, %c0_i32_0 : i32, i32, i32
  }
  func.func @transform_2(%arg0: i32) -> (i32, i32) {
    %c0_i32 = arith.constant 0 : i32
    %c0_i32_0 = arith.constant 0 : i32
    %c0_i32_1 = arith.constant 0 : i32
    return %c0_i32, %c0_i32_0 : i32, i32
  }
  func.func @transform_3(%arg0: i32) -> (i32, i32) {
    %c0_i32 = arith.constant 0 : i32
    %c0_i32_0 = arith.constant 0 : i32
    %c0_i32_1 = arith.constant 0 : i32
    return %c0_i32, %c0_i32_0 : i32, i32
  }
  func.func @transform_4(%arg0: i32) -> (i32, i32, i32) {
    %c0_i32 = arith.constant 0 : i32
    %c0_i32_0 = arith.constant 0 : i32
    %c0_i32_1 = arith.constant 0 : i32
    return %arg0, %c0_i32, %c0_i32_0 : i32, i32, i32
  }
}

</mosaic_0001>

<llo_original>
// kernel: tpu_custom_call.1
$region0: #{tpu_custom_call.1}
  #allocation0 [shape = 'u32[]', space=smem, size = 0x4, offset = 0x4, fixed_abs, tag = 'smem constant byte address 0x4 - core index']
  #allocation1 [shape = 'u32[72,128]{1,0:T(1,128)}', space=vmem, size = 0x9000, scoped, tag = 'internal scratch']
  %s0 = inlined_call_operand.vmem [shape: f32[2,8,256], index: 0, kind: input, shape index: {}]
  %s1 = inlined_call_operand.vmem [shape: f32[2,256,4], index: 1, kind: input, shape index: {}]
  %s2 = inlined_call_operand.vmem [shape: f32[4,128], index: 2, kind: input, shape index: {}]
  %s3 = inlined_call_operand.vmem [shape: f32[1,128], index: 3, kind: input, shape index: {}]
  %s4 = inlined_call_operand.hbm [shape: f32[2,8,128], index: 4, kind: output, shape index: {}]
  %s5 = sld [smem:[#allocation0]]
  $region49: #{tpu_custom_call.1} parent=0
    _
  %s7 = ssub.s32 1, %s5
  %s8 = scalar_select 0, %s7, %s5
  $region1: #{tpu_custom_call.1} parent=0
    #allocation2 [shape = 'u8[8192]{0}', space=vmem, size = 0x2000, scoped, tag = 'output window, operand 0']
    #allocation3 [shape = 's32[2]{0}', space=sflag, size = 0x8, scoped, tag = 'scoped memory for tpu_custom_call.1']
    %9 = vsyncpa [#allocation3], 0
    %s10 = scalar_lea.sflag [#allocation3], 1
    %11 = vsyncpa %s10, 0
    loop: start=0, step=1, limit=4
    $region2: #{tpu_custom_call.1} parent=1 // loop_pre_header
      _
    $region3: #{tpu_custom_call.1} parent=1 // loop_header
      %s13 = sphi 0, %s17
      %p14 = scmp.ge.s32.totalorder %s13, 4
      %s23 = sphi 0, %s25
      %s26 = sphi 0, %s23
      %s27 = sphi 0, %s26
      %s43 = sphi 0, %s27
      %s49 = sphi 0, %s51
      %s52 = sphi 0, %s49
      %s53 = sphi 0, %s52
      %s69 = sphi 0, %s53
      %s73 = sphi 0, %s73
      %s75 = sphi 0, %s73
      %s76 = sphi 0, %s75
      %s90 = sphi 0, %s76
      %s94 = sphi 0, %s94
      %s96 = sphi 0, %s94
      %s97 = sphi 0, %s96
      %s111 = sphi 0, %s97
      %s117 = sphi 0, %s119
      %s120 = sphi 0, %s117
      %s121 = sphi 0, %s120
      %s137 = sphi 0, %s121
    $region4: #{tpu_custom_call.1} parent=1 // loop_header_branch
      %16 = sbr.rel (%p14) target = $region8
    $region5: #{tpu_custom_call.1} parent=1 // loop_body
      %s18 = ssub.s32 %s13, 1
      %s19 = ssub.s32 %s13, 2
      %s20 = sadd.s32 %s13, 1
      %s21 = ssub.s32 %s13, %s20
      %p22 = scmp.eq.s32.totalorder %s21, 0
      %s24 = sadd.s32 %s23, 1
      %s25 = scalar_select %p22, %s23, %s24
      %p28 = pneg %p22
      %p29 = scmp.eq.s32.totalorder %s13, 1
      %p30 = por %p28, %p29
      %p31 = scmp.ne.s32.totalorder %s23, %s26
      %p32 = scmp.eq.s32.totalorder %s13, 0
      %p33 = por %p31, %p32
      %p34 = scmp.ne.s32.totalorder %s23, %s26
      %p35 = scmp.eq.s32.totalorder %s18, 1
      %p36 = por %p34, %p35
      %p37 = scmp.ne.s32.totalorder %s26, %s27
      %p38 = scmp.eq.s32.totalorder %s18, 0
      %p39 = por %p37, %p38
      %p40 = scmp.ne.s32.totalorder %s26, %s27
      %p41 = scmp.eq.s32.totalorder %s19, 1
      %p42 = por %p40, %p41
      %p44 = scmp.ne.s32.totalorder %s27, %s43
      %p45 = scmp.eq.s32.totalorder %s19, 0
      %p46 = por %p44, %p45
      %s47 = ssub.s32 %s13, %s20
      %p48 = scmp.eq.s32.totalorder %s47, 0
      %s50 = sadd.s32 %s49, 1
      %s51 = scalar_select %p48, %s49, %s50
      %p54 = pneg %p48
      %p55 = scmp.eq.s32.totalorder %s13, 1
      %p56 = por %p54, %p55
      %p57 = scmp.ne.s32.totalorder %s49, %s52
      %p58 = scmp.eq.s32.totalorder %s13, 0
      %p59 = por %p57, %p58
      %p60 = scmp.ne.s32.totalorder %s49, %s52
      %p61 = scmp.eq.s32.totalorder %s18, 1
      %p62 = por %p60, %p61
      %p63 = scmp.ne.s32.totalorder %s52, %s53
      %p64 = scmp.eq.s32.totalorder %s18, 0
      %p65 = por %p63, %p64
      %p66 = scmp.ne.s32.totalorder %s52, %s53
      %p67 = scmp.eq.s32.totalorder %s19, 1
      %p68 = por %p66, %p67
      %p70 = scmp.ne.s32.totalorder %s53, %s69
      %p71 = scmp.eq.s32.totalorder %s19, 0
      %p72 = por %p70, %p71
      %s74 = sadd.s32 %s73, 1
      %p77 = scmp.eq.s32.totalorder %s13, 1
      %p78 = scmp.ne.s32.totalorder %s73, %s75
      %p79 = scmp.eq.s32.totalorder %s13, 0
      %p80 = por %p78, %p79
      %p81 = scmp.ne.s32.totalorder %s73, %s75
      %p82 = scmp.eq.s32.totalorder %s18, 1
      %p83 = por %p81, %p82
      %p84 = scmp.ne.s32.totalorder %s75, %s76
      %p85 = scmp.eq.s32.totalorder %s18, 0
      %p86 = por %p84, %p85
      %p87 = scmp.ne.s32.totalorder %s75, %s76
      %p88 = scmp.eq.s32.totalorder %s19, 1
      %p89 = por %p87, %p88
      %p91 = scmp.ne.s32.totalorder %s76, %s90
      %p92 = scmp.eq.s32.totalorder %s19, 0
      %p93 = por %p91, %p92
      %s95 = sadd.s32 %s94, 1
      %p98 = scmp.eq.s32.totalorder %s13, 1
      %p99 = scmp.ne.s32.totalorder %s94, %s96
      %p100 = scmp.eq.s32.totalorder %s13, 0
      %p101 = por %p99, %p100
      %p102 = scmp.ne.s32.totalorder %s94, %s96
      %p103 = scmp.eq.s32.totalorder %s18, 1
      %p104 = por %p102, %p103
      %p105 = scmp.ne.s32.totalorder %s96, %s97
      %p106 = scmp.eq.s32.totalorder %s18, 0
      %p107 = por %p105, %p106
      %p108 = scmp.ne.s32.totalorder %s96, %s97
      %p109 = scmp.eq.s32.totalorder %s19, 1
      %p110 = por %p108, %p109
      %p112 = scmp.ne.s32.totalorder %s97, %s111
      %p113 = scmp.eq.s32.totalorder %s19, 0
      %p114 = por %p112, %p113
      %s115 = ssub.s32 %s13, %s20
      %p116 = scmp.eq.s32.totalorder %s115, 0
      %s118 = sadd.s32 %s117, 1
      %s119 = scalar_select %p116, %s117, %s118
      %p122 = pneg %p116
      %p123 = scmp.eq.s32.totalorder %s13, 1
      %p124 = por %p122, %p123
      %p125 = scmp.ne.s32.totalorder %s117, %s120
      %p126 = scmp.eq.s32.totalorder %s13, 0
      %p127 = por %p125, %p126
      %p128 = scmp.ne.s32.totalorder %s117, %s120
      %p129 = scmp.eq.s32.totalorder %s18, 1
      %p130 = por %p128, %p129
      %p131 = scmp.ne.s32.totalorder %s120, %s121
      %p132 = scmp.eq.s32.totalorder %s18, 0
      %p133 = por %p131, %p132
      %p134 = scmp.ne.s32.totalorder %s120, %s121
      %p135 = scmp.eq.s32.totalorder %s19, 1
      %p136 = por %p134, %p135
      %p138 = scmp.ne.s32.totalorder %s121, %s137
      %p139 = scmp.eq.s32.totalorder %s19, 0
      %p140 = por %p138, %p139
      %p141 = scmp.le.s32.totalorder 1, %s13
      %p142 = scmp.lt.s32.totalorder %s13, 3
      %p143 = pnand %p141, %p142
      %p144 = pneg %p143
      // Predicated region
      $region9: #{tpu_custom_call.1} parent=5 // pred_check
        _
      $region10: #{tpu_custom_call.1} parent=5 // pred_check_branch
        %146 = sbr.rel (%p143) target = $region12
      $region11: #{tpu_custom_call.1} parent=5 // pred_region
        %s147 = ssub.s32 %s13, 1
        // Predicated region
        $region13: #{tpu_custom_call.1} parent=11 // pred_check
          %p148 = pneg %p86
        $region14: #{tpu_custom_call.1} parent=11 // pred_check_branch
          %150 = sbr.rel (%p148) target = $region16
        $region15: #{tpu_custom_call.1} parent=11 // pred_region
          _
        $region16: #{tpu_custom_call.1} parent=11 // pred_fallthru
          _
        // Predicated region
        $region17: #{tpu_custom_call.1} parent=11 // pred_check
          %p151 = pneg %p107
        $region18: #{tpu_custom_call.1} parent=11 // pred_check_branch
          %153 = sbr.rel (%p151) target = $region20
        $region19: #{tpu_custom_call.1} parent=11 // pred_region
          _
        $region20: #{tpu_custom_call.1} parent=11 // pred_fallthru
          _
      $region12: #{tpu_custom_call.1} parent=5 // pred_fallthru
        _
      %p154 = scmp.lt.s32.totalorder %s13, 2
      // Predicated region
      $region21: #{tpu_custom_call.1} parent=5 // pred_check
        %p155 = pneg %p154
      $region22: #{tpu_custom_call.1} parent=5 // pred_check_branch
        %157 = sbr.rel (%p155) target = $region24
      $region23: #{tpu_custom_call.1} parent=5 // pred_region
        // Predicated region
        $region25: #{tpu_custom_call.1} parent=23 // pred_check
          %p158 = pneg %p33
        $region26: #{tpu_custom_call.1} parent=23 // pred_check_branch
          %160 = sbr.rel (%p158) target = $region28
        $region27: #{tpu_custom_call.1} parent=23 // pred_region
          %p161 = scmp.lt.s32.totalorder %s13, 1
          %s162 = scalar_select %p161, %s13, 1
          %s163 = smul.addr %s162, 2
          %s164 = smul.addr %s163, 8
          %s165 = scalar_lea.vmem %s0, %s164
        $region28: #{tpu_custom_call.1} parent=23 // pred_fallthru
          _
        // Predicated region
        $region29: #{tpu_custom_call.1} parent=23 // pred_check
          %p166 = pneg %p59
        $region30: #{tpu_custom_call.1} parent=23 // pred_check_branch
          %168 = sbr.rel (%p166) target = $region32
        $region31: #{tpu_custom_call.1} parent=23 // pred_region
          %p169 = scmp.lt.s32.totalorder %s13, 1
          %s170 = scalar_select %p169, %s13, 1
          %s171 = smul.addr %s170, 32
          %s172 = smul.addr %s171, 8
          %s173 = scalar_lea.vmem %s1, %s172
        $region32: #{tpu_custom_call.1} parent=23 // pred_fallthru
          _
      $region24: #{tpu_custom_call.1} parent=5 // pred_fallthru
        _
      %p174 = scmp.le.s32.totalorder 1, %s13
      %p175 = scmp.lt.s32.totalorder %s13, 3
      %p176 = pnand %p174, %p175
      %p177 = pneg %p176
      // Predicated region
      $region33: #{tpu_custom_call.1} parent=5 // pred_check
        _
      $region34: #{tpu_custom_call.1} parent=5 // pred_check_branch
        %179 = sbr.rel (%p176) target = $region36
      $region35: #{tpu_custom_call.1} parent=5 // pred_region
        %s180 = ssub.s32 %s13, 1
        %p181 = scmp.lt.s32.totalorder %s18, 1
        %s182 = scalar_select %p181, %s18, 1
        %s183 = smul.addr %s182, 2
        %s184 = smul.addr %s183, 8
        %s185 = scalar_lea.vmem %s0, %s184
        %p186 = pneg %p39
        %p187 = pneg %p36
        %p188 = scmp.lt.s32.totalorder %s18, 1
        %s189 = scalar_select %p188, %s18, 1
        %s190 = smul.addr %s189, 32
        %s191 = smul.addr %s190, 8
        %s192 = scalar_lea.vmem %s1, %s191
        %p193 = pneg %p65
        %p194 = pneg %p62
        %p195 = pneg %p86
        %p196 = pneg %p83
        %p197 = pneg %p107
        %p198 = pneg %p104
        %p199 = pneg %p133
        %p200 = pneg %p130
        %s201 = sand.u32 %s120, 1
        %s202 = scalar_lea.sflag [#allocation3], %s201
        %s203 = sand.u32 %s120, 1
        %s204 = smul.addr %s203, 8
        %s205 = scalar_lea.vmem [#allocation2], %s204
        %p206 = scmp.lt.s32.totalorder %s18, 1
        %s207 = scalar_select %p206, %s18, 1
        %s208 = smul.addr %s207, 2
        %s209 = smul.addr %s208, 8
        %s210 = scalar_lea.vmem %s0, %s209
        %p211 = scmp.lt.s32.totalorder %s18, 1
        %s212 = scalar_select %p211, %s18, 1
        %s213 = smul.addr %s212, 32
        %s214 = smul.addr %s213, 8
        %s215 = scalar_lea.vmem %s1, %s214
        %v216 = vld [vmem:[%s210] sm:$0xff]
        %v217 = vld [vmem:[%s210 + $0x8] sm:$0xff]
        %v218 = vld [vmem:[%s215] sm:$0xff]
        %v219 = vld [vmem:[%s215 + $0x8] sm:$0xff]
        %v220 = vld [vmem:[%s215 + $0x10] sm:$0xff]
        %v221 = vld [vmem:[%s215 + $0x18] sm:$0xff]
        %v222 = vld [vmem:[%s215 + $0x20] sm:$0xff]
        %v223 = vld [vmem:[%s215 + $0x28] sm:$0xff]
        %v224 = vld [vmem:[%s215 + $0x30] sm:$0xff]
        %v225 = vld [vmem:[%s215 + $0x38] sm:$0xff]
        %v226 = vld [vmem:[%s215 + $0x40] sm:$0xff]
        %v227 = vld [vmem:[%s215 + $0x48] sm:$0xff]
        %v228 = vld [vmem:[%s215 + $0x50] sm:$0xff]
        %v229 = vld [vmem:[%s215 + $0x58] sm:$0xff]
        %v230 = vld [vmem:[%s215 + $0x60] sm:$0xff]
        %v231 = vld [vmem:[%s215 + $0x68] sm:$0xff]
        %v232 = vld [vmem:[%s215 + $0x70] sm:$0xff]
        %v233 = vld [vmem:[%s215 + $0x78] sm:$0xff]
        %v234 = vld [vmem:[%s215 + $0x80] sm:$0xff]
        %v235 = vld [vmem:[%s215 + $0x88] sm:$0xff]
        %v236 = vld [vmem:[%s215 + $0x90] sm:$0xff]
        %v237 = vld [vmem:[%s215 + $0x98] sm:$0xff]
        %v238 = vld [vmem:[%s215 + $0xa0] sm:$0xff]
        %v239 = vld [vmem:[%s215 + $0xa8] sm:$0xff]
        %v240 = vld [vmem:[%s215 + $0xb0] sm:$0xff]
        %v241 = vld [vmem:[%s215 + $0xb8] sm:$0xff]
        %v242 = vld [vmem:[%s215 + $0xc0] sm:$0xff]
        %v243 = vld [vmem:[%s215 + $0xc8] sm:$0xff]
        %v244 = vld [vmem:[%s215 + $0xd0] sm:$0xff]
        %v245 = vld [vmem:[%s215 + $0xd8] sm:$0xff]
        %v246 = vld [vmem:[%s215 + $0xe0] sm:$0xff]
        %v247 = vld [vmem:[%s215 + $0xe8] sm:$0xff]
        %v248 = vld [vmem:[%s215 + $0xf0] sm:$0xff]
        %v249 = vld [vmem:[%s215 + $0xf8] sm:$0xff]
        %250 = vmatpush.msra.mxu0 %v233
        %251 = vmatpush.msra.mxu0 %v232
        %252 = vmatpush.msra.mxu0 %v231
        %253 = vmatpush.msra.mxu0 %v230
        %254 = vmatpush.msra.mxu0 %v229
        %255 = vmatpush.msra.mxu0 %v228
        %256 = vmatpush.msra.mxu0 %v227
        %257 = vmatpush.msra.mxu0 %v226
        %258 = vmatpush.msra.mxu0 %v225
        %259 = vmatpush.msra.mxu0 %v224
        %260 = vmatpush.msra.mxu0 %v223
        %261 = vmatpush.msra.mxu0 %v222
        %262 = vmatpush.msra.mxu0 %v221
        %263 = vmatpush.msra.mxu0 %v220
        %264 = vmatpush.msra.mxu0 %v219
        %265 = vmatpush.msra.mxu0 %v218
        %266 = vmatmul.f32.gmra.mxu0 %v216
        %v267 = vpop.f32.mrf.mxu0
        %v268 = vadd.f32 0.0, %v267
        %269 = vdwg.mxu0
        %270 = vmatpush.msra.mxu0 %v249
        %271 = vmatpush.msra.mxu0 %v248
        %272 = vmatpush.msra.mxu0 %v247
        %273 = vmatpush.msra.mxu0 %v246
        %274 = vmatpush.msra.mxu0 %v245
        %275 = vmatpush.msra.mxu0 %v244
        %276 = vmatpush.msra.mxu0 %v243
        %277 = vmatpush.msra.mxu0 %v242
        %278 = vmatpush.msra.mxu0 %v241
        %279 = vmatpush.msra.mxu0 %v240
        %280 = vmatpush.msra.mxu0 %v239
        %281 = vmatpush.msra.mxu0 %v238
        %282 = vmatpush.msra.mxu0 %v237
        %283 = vmatpush.msra.mxu0 %v236
        %284 = vmatpush.msra.mxu0 %v235
        %285 = vmatpush.msra.mxu0 %v234
        %286 = vmatmul.f32.gmra.mxu0 %v217
        %v287 = vpop.f32.mrf.mxu0
        %v288 = vadd.f32 %v268, %v287
        %289 = vdwg.mxu0
        %v290 = vld [vmem:[%s2] sm:$0xf]
        %v291 = vld [vmem:[%s3] sm:$0x1]
        %v293 = vperm.slane %v291, 0
        %v295 = vadd.f32 %v293, 0.0
        %297 = vset.pattern.permute.xlu0 0
        %298 = vperm.xlu0 %297, %v288
        %v299 = vpop.permute.xlu0 %298
        %v301 = vperm.slane %v290, 0
        %v302 = vmul.f32 %v299, %v301
        %v303 = vadd.f32 %v295, %v302
        %304 = vset.pattern.permute.xlu0 1
        %305 = vperm.xlu0 %304, %v288
        %v306 = vpop.permute.xlu0 %305
        %v308 = vperm.slane %v290, 1
        %v309 = vmul.f32 %v306, %v308
        %v310 = vadd.f32 %v303, %v309
        %311 = vset.pattern.permute.xlu0 2
        %312 = vperm.xlu0 %311, %v288
        %v313 = vpop.permute.xlu0 %312
        %v315 = vperm.slane %v290, 2
        %v316 = vmul.f32 %v313, %v315
        %v317 = vadd.f32 %v310, %v316
        %318 = vset.pattern.permute.xlu0 3
        %319 = vperm.xlu0 %318, %v288
        %v320 = vpop.permute.xlu0 %319
        %v322 = vperm.slane %v290, 3
        %v323 = vmul.f32 %v320, %v322
        %v324 = vadd.f32 %v317, %v323
        %325 = vst [vmem:[%s205] sm:$0xff] %v324
        %s326 = sand.u32 %s120, 1
        %s327 = scalar_lea.sflag [#allocation3], %s326
        %s328 = sand.u32 %s120, 1
        %s329 = smul.addr %s328, 8
        %s330 = scalar_lea.vmem [#allocation2], %s329
        // Predicated region
        $region37: #{tpu_custom_call.1} parent=35 // pred_check
          %p331 = pneg %p130
        $region38: #{tpu_custom_call.1} parent=35 // pred_check_branch
          %333 = sbr.rel (%p331) target = $region40
        $region39: #{tpu_custom_call.1} parent=35 // pred_region
          %335 = vsyncadd %s327, 0
          %s336 = smul.addr %s18, 8
          %s337 = scalar_lea.hbm %s4, %s336
          %s339 = sshll.u32 %s330, 4
          %s340 = int_to_ptr.vmem [resolvable:$true] %s339
          %s341 = sshll.u32 %s337, 4
          %s342 = int_to_ptr.hbm [resolvable:$true] %s341
          %344 = dma.vmem_to_hbm [thread:$0]  %s340, 128, %s342, %s327
        $region40: #{tpu_custom_call.1} parent=35 // pred_fallthru
          _
      $region36: #{tpu_custom_call.1} parent=5 // pred_fallthru
        _
      %p345 = scmp.le.s32.totalorder 2, %s13
      // Predicated region
      $region41: #{tpu_custom_call.1} parent=5 // pred_check
        %p346 = pneg %p345
      $region42: #{tpu_custom_call.1} parent=5 // pred_check_branch
        %348 = sbr.rel (%p346) target = $region44
      $region43: #{tpu_custom_call.1} parent=5 // pred_region
        %s349 = ssub.s32 %s13, 2
        // Predicated region
        $region45: #{tpu_custom_call.1} parent=43 // pred_check
          %p350 = pneg %p136
        $region46: #{tpu_custom_call.1} parent=43 // pred_check_branch
          %352 = sbr.rel (%p350) target = $region48
        $region47: #{tpu_custom_call.1} parent=43 // pred_region
          %s353 = sand.u32 %s121, 1
          %s354 = scalar_lea.sflag [#allocation3], %s353
          %s355 = sand.u32 %s121, 1
          %s356 = smul.addr %s355, 8
          %s357 = scalar_lea.vmem [#allocation2], %s356
          %359 = dma.done %s354, 128
        $region48: #{tpu_custom_call.1} parent=43 // pred_fallthru
          _
      $region44: #{tpu_custom_call.1} parent=5 // pred_fallthru
        _
    $region6: #{tpu_custom_call.1} parent=1 // loop_footer
      %s17 = sadd.s32 1, %s13
    $region7: #{tpu_custom_call.1} parent=1 // loop_footer_branch
      %12 = sbr.rel target = $region3
    $region8: #{tpu_custom_call.1} parent=1 // loop_exit
      _
    %360 = vsyncpa [#allocation3], 1
    %s361 = scalar_lea.sflag [#allocation3], 1
    %362 = vsyncpa %s361, 1

</llo_original>
